<compile_context>
chip_gen: v7x
topology: tpu7x:2x2x1
jax: 0.10.0
libtpu: 0.0.40
codegen_flags: <defaults>
</compile_context>

<pallas_src>
import functools

import jax
import jax.numpy as jnp
from jax.experimental import pallas as pl
from jax.experimental.pallas import tpu as pltpu

BITWIDTH = 8        # nf_fix_params["activation"]["bitwidth"]
EPS = 1e-5          # EPS used by nics_fix_pt FIX_AUTO scale update

_LANE = 1024            # lane-dense slab width (multiple of 128)
_MAX_ROW_TILE = 1024    # 1024 * 1024 * 4B = 4 MiB f32 blocks (two-pass path)
_FUSED_MAX_ROWS = 512   # <= 2 MiB f32 slab -> single fused launch
_VMEM_LIMIT_TILED = 40 * 1024 * 1024
_VMEM_LIMIT_FUSED = 48 * 1024 * 1024


def _cdiv(a, b):
    return -(-a // b)


# --------------------------------------------------------------------------
# exact 2**k helpers (k integer, normal-f32 exponent range)
# --------------------------------------------------------------------------
def _pow2_f32_host(k_int32):
    """Exact 2**k as f32 via exponent-bit construction (XLA, host side)."""
    bits = (k_int32.astype(jnp.int32) + 127) << 23
    return jax.lax.bitcast_convert_type(bits, jnp.float32)


# --------------------------------------------------------------------------
# kernels
# --------------------------------------------------------------------------
def _fused_kernel(x_ref, o_ref, *, qmin, qmax, frac_bits):
    """Single-block: abs-max -> exact pow2 step -> quantize, all in VMEM."""
    x = x_ref[...].astype(jnp.float32)
    absx = jnp.abs(x)
    max_abs = jnp.max(absx, axis=1, keepdims=True)          # (rows, 1)  lane reduce
    max_abs = jnp.max(max_abs, axis=0, keepdims=True)        # (1, 1)     sublane reduce
    max_abs = jnp.maximum(max_abs, jnp.float32(EPS))

    # Exact ceil(log2(max_abs)) from the f32 exponent/mantissa bits
    # (avoids transcendental 1-ulp errors at exact powers of two).
    bits = pltpu.bitcast(max_abs, jnp.int32)                  # max_abs > 0 -> sign bit 0
    exp = ((bits >> 23) & 0xFF) - 127
    mant = bits & 0x7FFFFF
    scale = exp + jnp.where(mant != 0, jnp.int32(1), jnp.int32(0))   # (1,1) int32

    # step = 2**(scale - (bw-1)), inv_step = 2**((bw-1) - scale), both exact.
    step = pltpu.bitcast(((scale - frac_bits) + 127) << 23, jnp.float32)
    inv_step = pltpu.bitcast(((frac_bits - scale) + 127) << 23, jnp.float32)

    q = jnp.clip(jnp.round(x * inv_step), qmin, qmax) * step
    o_ref[...] = q.astype(o_ref.dtype)


def _absmax_kernel(x_ref, partial_ref, *, row_tile, valid_rows, need_mask):
    """Per-tile max(|x|) reduced over sublanes only -> lane-dense (1, LANE) partial."""
    absx = jnp.abs(x_ref[...].astype(jnp.float32))
    if need_mask:
        # Last block is ragged: out-of-bounds rows hold undefined data and must
        # not inflate the max.
        row0 = pl.program_id(0) * row_tile
        rid = jax.lax.broadcasted_iota(jnp.int32, absx.shape, 0) + row0
        absx = jnp.where(rid < valid_rows, absx, jnp.float32(0.0))
    partial_ref[...] = jnp.max(absx, axis=0, keepdims=True).reshape(partial_ref.shape)


def _quantize_kernel(params_ref, x_ref, o_ref, *, qmin, qmax):
    """Elementwise quantize: round(x * inv_step) clamped in int domain, * step."""
    step = params_ref[0]        # scalar f32 from SMEM
    inv_step = params_ref[1]    # exact power-of-two reciprocal of step
    x = x_ref[...].astype(jnp.float32)
    q = jnp.clip(jnp.round(x * inv_step), qmin, qmax) * step
    o_ref[...] = q.astype(o_ref.dtype)


# --------------------------------------------------------------------------
# dispatch paths
# --------------------------------------------------------------------------
def _fused_call(x2d, out_dtype, qmin, qmax, bitwidth):
    rows, lane = x2d.shape
    kernel = functools.partial(_fused_kernel, qmin=qmin, qmax=qmax,
                               frac_bits=bitwidth - 1)
    return pl.pallas_call(
        kernel,
        out_shape=jax.ShapeDtypeStruct((rows, lane), out_dtype),
        grid_spec=pltpu.PrefetchScalarGridSpec(
            num_scalar_prefetch=0,
            grid=(1,),
            in_specs=[pl.BlockSpec((rows, lane), lambda i: (0, 0))],
            out_specs=pl.BlockSpec((rows, lane), lambda i: (0, 0)),
        ),
        compiler_params=pltpu.CompilerParams(
            dimension_semantics=("arbitrary",),
            vmem_limit_bytes=_VMEM_LIMIT_FUSED,
        ),
    )(x2d)


def _two_pass_call(x2d, out_dtype, qmin, qmax, bitwidth):
    rows, lane = x2d.shape
    # row_tile: multiple of 8, never larger than the array (ragged last block OK).
    row_tile = min(_MAX_ROW_TILE, (rows // 8) * 8)
    num_tiles = _cdiv(rows, row_tile)
    need_mask = (rows % row_tile) != 0

    cp = pltpu.CompilerParams(
        dimension_semantics=("parallel",),
        vmem_limit_bytes=_VMEM_LIMIT_TILED,
    )

    # ---- pass 1: tiled global abs-max (sublane reduce, lane-dense partials) --
    absmax_kernel = functools.partial(
        _absmax_kernel, row_tile=row_tile, valid_rows=rows, need_mask=need_mask)
    partials = pl.pallas_call(
        absmax_kernel,
        out_shape=jax.ShapeDtypeStruct((num_tiles, 1, lane), jnp.float32),
        grid_spec=pltpu.PrefetchScalarGridSpec(
            num_scalar_prefetch=0,
            grid=(num_tiles,),
            in_specs=[pl.BlockSpec((row_tile, lane), lambda i: (i, 0))],
            out_specs=pl.BlockSpec((1, 1, lane), lambda i: (i, 0, 0)),
        ),
        compiler_params=cp,
    )(x2d)

    # Tiny host-side combine + scale/step derivation (once per tensor).
    max_abs = jnp.maximum(jnp.max(partials), jnp.float32(EPS))
    scale = jnp.ceil(jnp.log2(max_abs)).astype(jnp.int32)
    step = _pow2_f32_host(scale - (bitwidth - 1))        # exact power of two
    inv_step = _pow2_f32_host((bitwidth - 1) - scale)    # exact reciprocal
    params = jnp.stack([step, inv_step]).astype(jnp.float32)

    # ---- pass 2: tiled quantize --------------------------------------------
    kernel = functools.partial(_quantize_kernel, qmin=qmin, qmax=qmax)
    return pl.pallas_call(
        kernel,
        out_shape=jax.ShapeDtypeStruct((rows, lane), out_dtype),
        grid_spec=pltpu.PrefetchScalarGridSpec(
            num_scalar_prefetch=0,
            grid=(num_tiles,),
            in_specs=[
                pl.BlockSpec(memory_space=pltpu.MemorySpace.SMEM),   # [step, inv_step]
                pl.BlockSpec((row_tile, lane), lambda i: (i, 0)),
            ],
            out_specs=pl.BlockSpec((row_tile, lane), lambda i: (i, 0)),
        ),
        compiler_params=cp,
    )(params, x2d)


# --------------------------------------------------------------------------
# public wrapper
# --------------------------------------------------------------------------
def activation_fix(x, bitwidth=BITWIDTH):
    """Pallas implementation of Activation_fix.forward (FIX_AUTO quantization).

    x: float activation tensor (any shape, e.g. NCHW). Returns same shape/dtype.
    """
    orig_shape = x.shape
    orig_dtype = x.dtype
    n = x.size
    if n == 0:
        return x

    rows = _cdiv(n, _LANE)
    padded = (rows * _LANE) != n

    flat = x.reshape(-1)
    if padded:
        # Only when numel % 1024 != 0; zero padding never inflates max(|x|).
        flat = jnp.pad(flat, (0, rows * _LANE - n))
    x2d = flat.reshape(rows, _LANE)

    qmin = float(-(2 ** (bitwidth - 1)))
    qmax = float(2 ** (bitwidth - 1) - 1)

    if rows <= _FUSED_MAX_ROWS:
        out2d = _fused_call(x2d, orig_dtype, qmin, qmax, bitwidth)
    else:
        out2d = _two_pass_call(x2d, orig_dtype, qmin, qmax, bitwidth)

    if padded:
        return out2d.reshape(-1)[:n].reshape(orig_shape)
    return out2d.reshape(orig_shape)


# --------------------------------------------------------------------------
# reference (mirrors nics_fix_pt quantitize() FIX_AUTO path)
# --------------------------------------------------------------------------
def _reference_activation_fix(x, bitwidth=BITWIDTH):
    xf = x.astype(jnp.float32)
    max_abs = jnp.maximum(jnp.max(jnp.abs(xf)), jnp.float32(EPS))
    scale = jnp.ceil(jnp.log2(max_abs)).astype(jnp.int32)
    step = _pow2_f32_host(scale - (bitwidth - 1))    # intended value is exactly 2**k
    minimum = -_pow2_f32_host(scale)
    maximum = -minimum - step
    q = jnp.minimum(jnp.maximum(jnp.round(xf / step) * step, minimum), maximum)
    return q.astype(x.dtype)


if __name__ == "__main__":
    key = jax.random.PRNGKey(0)
    k1, k2 = jax.random.split(key)

    # Primary: small NCHW activation tensor -> fused single-launch path.
    x = jax.random.normal(k1, (2, 4, 16, 16), dtype=jnp.float32) * 3.0
    out = jax.block_until_ready(activation_fix(x))
    ref = _reference_activation_fix(x)
    assert out.shape == x.shape and out.dtype == x.dtype
    assert jnp.allclose(out, ref, atol=1e-6, rtol=1e-6), float(jnp.max(jnp.abs(out - ref)))

    # Secondary: larger ragged tensor -> two-pass tiled path with edge-block
    # masking plus lane padding / tail slice.
    y = jax.random.normal(k2, (2, 3, 321, 350), dtype=jnp.float32) * 1.7
    out2 = jax.block_until_ready(activation_fix(y))
    ref2 = _reference_activation_fix(y)
    assert out2.shape == y.shape and out2.dtype == y.dtype
    assert jnp.allclose(out2, ref2, atol=1e-6, rtol=1e-6), float(jnp.max(jnp.abs(out2 - ref2)))

    print("KERNEL_OK")
</pallas_src>

<mosaic_0001>
module attributes {stable_mosaic.version = 11 : i64} {
  func.func @_fused_kernel(%arg0: i32, %arg1: memref<2x1024xf32, #tpu.memory_space<vmem>>, %arg2: memref<2x1024xf32, #tpu.memory_space<vmem>>) attributes {dimension_semantics = [#tpu.dimension_semantics<arbitrary>], iteration_bounds = array<i64: 1>, scalar_prefetch = 0 : i64, scratch_operands = 0 : i64, tpu.core_type = #tpu.core_type<tc>, window_params = [{pipeline_mode = #tpu.pipeline_mode<synchronous>, transform_indices = @transform_0, window_bounds = array<i64: 2, 1024>}, {pipeline_mode = #tpu.pipeline_mode<synchronous>, transform_indices = @transform_1, window_bounds = array<i64: 2, 1024>}]} {
    %c0 = arith.constant 0 : index
    %c0_0 = arith.constant 0 : index
    %0 = vector.load %arg1[%c0, %c0_0] : memref<2x1024xf32, #tpu.memory_space<vmem>>, vector<2x1024xf32>
    %1 = math.absf %0 : vector<2x1024xf32>
    %cst = arith.constant dense<0xFF800000> : vector<2xf32>
    %2 = vector.multi_reduction <maximumf>, %1, %cst [1] : vector<2x1024xf32> to vector<2xf32>
    %3 = vector.shape_cast %2 : vector<2xf32> to vector<2x1xf32>
    %cst_1 = arith.constant dense<0xFF800000> : vector<1xf32>
    %4 = vector.multi_reduction <maximumf>, %3, %cst_1 [0] : vector<2x1xf32> to vector<1xf32>
    %5 = vector.shape_cast %4 : vector<1xf32> to vector<1x1xf32>
    %cst_2 = arith.constant 9.99999974E-6 : f32
    %6 = vector.broadcast %cst_2 : f32 to vector<1x1xf32>
    %7 = arith.maximumf %5, %6 : vector<1x1xf32>
    %8 = tpu.bitcast %7 : vector<1x1xf32> -> vector<1x1xi32>
    %c23_i32 = arith.constant 23 : i32
    %9 = vector.broadcast %c23_i32 : i32 to vector<1x1xi32>
    %10 = arith.shrsi %8, %9 : vector<1x1xi32>
    %c255_i32 = arith.constant 255 : i32
    %11 = vector.broadcast %c255_i32 : i32 to vector<1x1xi32>
    %12 = arith.andi %10, %11 : vector<1x1xi32>
    %c127_i32 = arith.constant 127 : i32
    %13 = vector.broadcast %c127_i32 : i32 to vector<1x1xi32>
    %14 = arith.subi %12, %13 : vector<1x1xi32>
    %c8388607_i32 = arith.constant 8388607 : i32
    %15 = vector.broadcast %c8388607_i32 : i32 to vector<1x1xi32>
    %16 = arith.andi %8, %15 : vector<1x1xi32>
    %c0_i32 = arith.constant 0 : i32
    %17 = vector.broadcast %c0_i32 : i32 to vector<1x1xi32>
    %18 = arith.cmpi ne, %16, %17 : vector<1x1xi32>
    %c1_i32 = arith.constant 1 : i32
    %c0_i32_3 = arith.constant 0 : i32
    %19 = vector.broadcast %c1_i32 : i32 to vector<1x1xi32>
    %20 = vector.broadcast %c0_i32_3 : i32 to vector<1x1xi32>
    %21 = arith.select %18, %19, %20 : vector<1x1xi1>, vector<1x1xi32>
    %22 = arith.addi %14, %21 : vector<1x1xi32>
    %c7_i32 = arith.constant 7 : i32
    %23 = vector.broadcast %c7_i32 : i32 to vector<1x1xi32>
    %24 = arith.subi %22, %23 : vector<1x1xi32>
    %c127_i32_4 = arith.constant 127 : i32
    %25 = vector.broadcast %c127_i32_4 : i32 to vector<1x1xi32>
    %26 = arith.addi %24, %25 : vector<1x1xi32>
    %c23_i32_5 = arith.constant 23 : i32
    %27 = vector.broadcast %c23_i32_5 : i32 to vector<1x1xi32>
    %28 = arith.shli %26, %27 : vector<1x1xi32>
    %29 = tpu.bitcast %28 : vector<1x1xi32> -> vector<1x1xf32>
    %c7_i32_6 = arith.constant 7 : i32
    %30 = vector.broadcast %c7_i32_6 : i32 to vector<1x1xi32>
    %31 = arith.subi %30, %22 : vector<1x1xi32>
    %c127_i32_7 = arith.constant 127 : i32
    %32 = vector.broadcast %c127_i32_7 : i32 to vector<1x1xi32>
    %33 = arith.addi %31, %32 : vector<1x1xi32>
    %c23_i32_8 = arith.constant 23 : i32
    %34 = vector.broadcast %c23_i32_8 : i32 to vector<1x1xi32>
    %35 = arith.shli %33, %34 : vector<1x1xi32>
    %36 = tpu.bitcast %35 : vector<1x1xi32> -> vector<1x1xf32>
    %37 = vector.broadcast %36 : vector<1x1xf32> to vector<2x1024xf32>
    %38 = arith.mulf %0, %37 : vector<2x1024xf32>
    %39 = math.roundeven %38 : vector<2x1024xf32>
    %cst_9 = arith.constant -1.280000e+02 : f32
    %cst_10 = arith.constant 1.270000e+02 : f32
    %40 = vector.broadcast %cst_9 : f32 to vector<2x1024xf32>
    %41 = arith.maximumf %40, %39 : vector<2x1024xf32>
    %42 = vector.broadcast %cst_10 : f32 to vector<2x1024xf32>
    %43 = arith.minimumf %42, %41 : vector<2x1024xf32>
    %44 = vector.broadcast %29 : vector<1x1xf32> to vector<2x1024xf32>
    %45 = arith.mulf %43, %44 : vector<2x1024xf32>
    %c0_11 = arith.constant 0 : index
    %c0_12 = arith.constant 0 : index
    %46 = vector.load %arg2[%c0_11, %c0_12] : memref<2x1024xf32, #tpu.memory_space<vmem>>, vector<2x1024xf32>
    tpu.vector_store %arg2[%c0_11, %c0_12], %45 {strides = array<i32>} : memref<2x1024xf32, #tpu.memory_space<vmem>>, vector<2x1024xf32>,
    return
  }
  func.func @transform_0(%arg0: i32) -> (i32, i32) {
    %c0_i32 = arith.constant 0 : i32
    %c0_i32_0 = arith.constant 0 : i32
    %c0_i32_1 = arith.constant 0 : i32
    return %c0_i32, %c0_i32_0 : i32, i32
  }
  func.func @transform_1(%arg0: i32) -> (i32, i32) {
    %c0_i32 = arith.constant 0 : i32
    %c0_i32_0 = arith.constant 0 : i32
    %c0_i32_1 = arith.constant 0 : i32
    return %c0_i32, %c0_i32_0 : i32, i32
  }
}

</mosaic_0001>

<llo_original>
// kernel: tpu_custom_call.1
$region0: #{tpu_custom_call.1}
  #allocation0 [shape = 'u32[]', space=smem, size = 0x4, offset = 0x4, fixed_abs, tag = 'smem constant byte address 0x4 - core index']
  #allocation1 [shape = 'u32[144,128]{1,0:T(1,128)}', space=vmem, size = 0x12000, scoped, tag = 'internal scratch']
  %s0 = inlined_call_operand.hbm [shape: f32[2,1024], index: 0, kind: input, shape index: {}]
  %s1 = inlined_call_operand.hbm [shape: f32[2,1024], index: 1, kind: output, shape index: {}]
  %s2 = sld [smem:[#allocation0]]
  $region18: #{tpu_custom_call.1} parent=0
    _
  %s4 = ssub.s32 1, %s2
  %s5 = scalar_select 0, %s4, %s2
  $region1: #{tpu_custom_call.1} parent=0
    #allocation2 [shape = 'u8[8192]{0}', space=vmem, size = 0x2000, scoped, tag = 'input window, operand 0, single buffered']
    #allocation3 [shape = 's32[1]{0}', space=sflag, size = 0x4, scoped, tag = 'scoped memory for tpu_custom_call.1']
    #allocation4 [shape = 's32[1]{0}', space=sflag, size = 0x4, scoped, tag = 'scoped memory for tpu_custom_call.1']
    #allocation5 [shape = 'u8[8192]{0}', space=vmem, size = 0x2000, scoped, tag = 'output window, operand 0, single buffered']
    %6 = vsyncpa [#allocation3], 0
    %7 = vsyncpa [#allocation4], 0
    // Predicated region
    $region2: #{tpu_custom_call.1} parent=1 // pred_check
      _
    $region3: #{tpu_custom_call.1} parent=1 // pred_check_branch
      %9 = sbr.rel (0) target = $region5
    $region4: #{tpu_custom_call.1} parent=1 // pred_region
      %s11 = ssub.s32 256, 256
      %12 = vsyncadd [#allocation3], %s11
      %s14 = sshll.u32 [#allocation2], 4
      %s15 = int_to_ptr.vmem [resolvable:$true] %s14
      %17 = dma.hbm_to_vmem [thread:$0]  %s0, 256, %s15, [#allocation3]
    $region5: #{tpu_custom_call.1} parent=1 // pred_fallthru
      _
    // Predicated region
    $region6: #{tpu_custom_call.1} parent=1 // pred_check
      _
    $region7: #{tpu_custom_call.1} parent=1 // pred_check_branch
      %19 = sbr.rel (0) target = $region9
    $region8: #{tpu_custom_call.1} parent=1 // pred_region
      %20 = dma.done [#allocation3], 256
    $region9: #{tpu_custom_call.1} parent=1 // pred_fallthru
      _
    %v21 = vld [vmem:[#allocation2] sm:$0xff]
    %v22 = vld [vmem:[#allocation2 + $0x8] sm:$0xff]
    %v23 = vand.u32 2147483647, %v21
    %v24 = vand.u32 2147483647, %v22
    %v27 = vcombine.high %v23, %v23
    %v29 = vunpack.c.l.s4 1983009808
    %v30 = vunpack.c.0.s8 %v29
    %v31 = vlaneseq
    %v32 = vshrl.u32 %v31, 7
    %v33 = vsub.s32 %v30, %v32
    %v34 = vrot.slane %v23, %v33
    %v36 = vunpack.c.l.s4 1983009808
    %v37 = vunpack.c.0.s8 %v36
    %v38 = vlaneseq
    %v39 = vshrl.u32 %v38, 7
    %v40 = vsub.s32 %v37, %v39
    %v41 = vrot.slane %v27, %v40
    %v42 = vcombine.high %v34, %v34
    %v43 = vcombine.high %v41, %v41
    %v44 = vcombine.high %v24, %v24
    %v46 = vunpack.c.l.s4 1983009808
    %v47 = vunpack.c.0.s8 %v46
    %v48 = vlaneseq
    %v49 = vshrl.u32 %v48, 7
    %v50 = vsub.s32 %v47, %v49
    %v51 = vrot.slane %v24, %v50
    %v53 = vunpack.c.l.s4 1983009808
    %v54 = vunpack.c.0.s8 %v53
    %v55 = vlaneseq
    %v56 = vshrl.u32 %v55, 7
    %v57 = vsub.s32 %v54, %v56
    %v58 = vrot.slane %v44, %v57
    %v59 = vcombine.high %v51, %v51
    %v60 = vcombine.high %v58, %v58
    %vm69 = vcmask 1041408
    %v70 = vsel %vm69, %v34, -inf
    %v71 = vsel %vm69, %v42, -inf
    %v72 = vsel %vm69, %v41, -inf
    %v73 = vsel %vm69, %v43, -inf
    %v74 = vsel %vm69, %v51, -inf
    %v75 = vmax.f32 %v70, %v74
    %v76 = vsel %vm69, %v59, -inf
    %v77 = vmax.f32 %v71, %v76
    %v78 = vsel %vm69, %v58, -inf
    %v79 = vmax.f32 %v72, %v78
    %v80 = vsel %vm69, %v60, -inf
    %v81 = vmax.f32 %v73, %v80
    %v82 = vmax.f32 %v75, %v77
    %v83 = vmax.f32 %v79, %v81
    %v84 = vmax.f32 %v82, %v83
    %85 = vmax.xlane.f32.xlu0 %v84
    %v86 = vpop.xlane.xlu0 %85
    %v87 = vsel %vm69, %v86, -inf
    %v88 = vrot.slane %v87, 4
    %v89 = vmax.f32 %v87, %v88
    %v90 = vrot.slane %v89, 2
    %v91 = vmax.f32 %v89, %v90
    %v92 = vrot.slane %v91, 1
    %v93 = vmax.f32 %v91, %v92
    %v94 = vmax.f32 %v93, 1e-05
    %v96 = vshra.s32 %v94, 23
    %v97 = vand.u32 %v96, 255
    %v98 = vsub.s32 %v97, 127
    %v99 = vand.u32 %v94, 8388607
    %vm100 = vcmp.ne.s32.totalorder %v99, 0
    %v101 = vsel %vm100, 1, 0
    %v102 = vadd.s32 %v98, %v101
    %v103 = vsub.s32 %v102, 7
    %v104 = vadd.s32 %v103, 127
    %v105 = vshll.u32 %v104, 23
    %v107 = vsub.s32 7, %v102
    %v108 = vadd.s32 %v107, 127
    %v109 = vshll.u32 %v108, 23
    %v111 = vmul.f32 %v21, %v109
    %v112 = vmul.f32 %v22, %v109
    %v113 = vround.ne.pseudo %v111
    %v114 = vround.ne.pseudo %v112
    %v115 = vmax.f32 %v113, -128.0
    %v116 = vmax.f32 %v114, -128.0
    %v117 = vmin.f32 %v115, 127.0
    %v118 = vmin.f32 %v116, 127.0
    %v119 = vmul.f32 %v117, %v105
    %v120 = vmul.f32 %v118, %v105
    %121 = vst [vmem:[#allocation5] sm:$0xff] %v119
    %122 = vst [vmem:[#allocation5 + $0x8] sm:$0xff] %v120
    // Predicated region
    $region10: #{tpu_custom_call.1} parent=1 // pred_check
      _
    $region11: #{tpu_custom_call.1} parent=1 // pred_check_branch
      %124 = sbr.rel (0) target = $region13
    $region12: #{tpu_custom_call.1} parent=1 // pred_region
      %s126 = ssub.s32 256, 256
      %127 = vsyncadd [#allocation4], %s126
      %s129 = sshll.u32 [#allocation5], 4
      %s130 = int_to_ptr.vmem [resolvable:$true] %s129
      %132 = dma.vmem_to_hbm [thread:$0]  %s130, 256, %s1, [#allocation4]
    $region13: #{tpu_custom_call.1} parent=1 // pred_fallthru
      _
    // Predicated region
    $region14: #{tpu_custom_call.1} parent=1 // pred_check
      _
    $region15: #{tpu_custom_call.1} parent=1 // pred_check_branch
      %134 = sbr.rel (0) target = $region17
    $region16: #{tpu_custom_call.1} parent=1 // pred_region
      %135 = dma.done [#allocation4], 256
    $region17: #{tpu_custom_call.1} parent=1 // pred_fallthru
      _
    %136 = vsyncpa [#allocation3], 1
    %137 = vsyncpa [#allocation4], 1

</llo_original>
